<compile_context>
chip_gen: v7x
topology: tpu7x:2x2x1
jax: 0.10.0
libtpu: 0.0.40
codegen_flags: <defaults>
</compile_context>

<pallas_src>
import math

import jax
import jax.numpy as jnp
import numpy as np
from jax.experimental import pallas as pl
from jax.experimental.pallas import tpu as pltpu


# ----------------------------------------------------------------------------
# Tiling helper
# ----------------------------------------------------------------------------
def _choose_tiles(B, N, D, bytes_per_elem=4, vmem_budget=12 * 1024 * 1024):
    """Pick (TB, TN).  TN is the full N for small problems, otherwise a lane-aligned
    (multiple of 128) tile sized so the double-buffered streamed block stays well
    inside the default scoped-VMEM limit on every TPU generation."""
    TB = B if B <= 8 else 8

    def footprint(tn):  # double-buffered dominant (TB, tn, D) stream
        return 2 * TB * tn * D * bytes_per_elem

    if N <= 128 or (footprint(N) <= vmem_budget and N <= 512):
        return TB, N
    TN = 512
    while TN > 128 and footprint(TN) > vmem_budget:
        TN //= 2
    return TB, TN


# ----------------------------------------------------------------------------
# Tiled Pallas scoring kernel
# ----------------------------------------------------------------------------
def _score_tiled(head, relation, tail, model_name, fm, gamma, embedding_range, modulus):
    """head: (B, Nh, De), relation: (B, Nr, Dr), tail: (B, Nt, De); returns (B, N) f32.
    fm is the formula branch: 'head-batch' or 'tail-batch' ('single' uses the latter)."""
    f32 = jnp.float32
    B, Nh, De = head.shape
    _, Nr, Dr = relation.shape
    _, Nt, _ = tail.shape
    N = max(Nh, Nt, Nr)
    for n_op in (Nh, Nr, Nt):
        if n_op not in (1, N):
            raise ValueError('operand sample dims must be 1 or N')

    TB, TN = _choose_tiles(B, N, De)
    grid = (pl.cdiv(B, TB), pl.cdiv(N, TN))

    def op_spec(n_op, d_full, n_d_blocks=1, d_idx=0):
        n_blk = 1 if n_op == 1 else TN
        d_blk = d_full // n_d_blocks
        if n_op == 1:
            imap = lambda bi, ni, d_idx=d_idx: (bi, 0, d_idx)
        else:
            imap = lambda bi, ni, d_idx=d_idx: (bi, ni, d_idx)
        return pl.BlockSpec((TB, n_blk, d_blk), imap)

    out_spec = pl.BlockSpec((TB, TN), lambda bi, ni: (bi, ni))
    out_shape = jax.ShapeDtypeStruct((B, N), f32)

    gamma = float(gamma)
    modulus = float(modulus)
    inv_rot = math.pi / float(embedding_range)                # RotatE phase scale (pi / (er))
    inv_prot = 3.1415926235897933 / float(embedding_range)    # pRotatE keeps the repo's pi typo

    scratch_shapes = []
    n_sem = "parallel"

    if model_name in ('TransE', 'pRotatE', 'DistMult'):
        operands = [head, relation, tail]
        in_specs = [op_spec(Nh, De), op_spec(Nr, Dr), op_spec(Nt, De)]

        def kernel(h_ref, r_ref, t_ref, o_ref):
            h = h_ref[...].astype(f32)
            r = r_ref[...].astype(f32)
            t = t_ref[...].astype(f32)
            if model_name == 'TransE':
                s = h + (r - t) if fm == 'head-batch' else h + r - t
                out = gamma - jnp.sum(jnp.abs(s), axis=2)
            elif model_name == 'pRotatE':
                # fold the three /(er/pi) divisions into one post-add multiply
                s = h + (r - t) if fm == 'head-batch' else h + r - t
                out = gamma - jnp.sum(jnp.abs(jnp.sin(s * inv_prot)), axis=2) * modulus
            else:  # DistMult: MXU contraction of (small vector) . (big matrix)
                if Nh == 1 and Nt > 1:      # tail-batch: sum_d (h*r) * tail
                    out = jnp.einsum('bkd,bnd->bkn', h * r, t,
                                     preferred_element_type=f32)[:, 0, :]
                elif Nt == 1 and Nh > 1:    # head-batch: sum_d (r*t) * head
                    out = jnp.einsum('bkd,bnd->bkn', r * t, h,
                                     preferred_element_type=f32)[:, 0, :]
                else:                        # all operands per-sample (single mode)
                    s = h * (r * t) if fm == 'head-batch' else h * r * t
                    out = jnp.sum(s, axis=2)
            o_ref[...] = out.astype(o_ref.dtype)

    elif model_name == 'ComplEx':
        Dh = De // 2
        if Dh % 128 == 0:
            # lane-aligned halves: same arrays passed twice with D-block index 0/1
            operands = [head, head, relation, relation, tail, tail]
            in_specs = [op_spec(Nh, De, 2, 0), op_spec(Nh, De, 2, 1),
                        op_spec(Nr, Dr, 2, 0), op_spec(Nr, Dr, 2, 1),
                        op_spec(Nt, De, 2, 0), op_spec(Nt, De, 2, 1)]

            def kernel(rh_ref, ih_ref, rr_ref, ir_ref, rt_ref, it_ref, o_ref):
                rh = rh_ref[...].astype(f32); ih = ih_ref[...].astype(f32)
                rr = rr_ref[...].astype(f32); ir = ir_ref[...].astype(f32)
                rt = rt_ref[...].astype(f32); it = it_ref[...].astype(f32)
                if Nh == 1 and Nt > 1:       # tail-batch: small (head,rel), big tail
                    rs = rh * rr - ih * ir
                    is_ = rh * ir + ih * rr
                    out = (jnp.einsum('bkd,bnd->bkn', rs, rt, preferred_element_type=f32)
                           + jnp.einsum('bkd,bnd->bkn', is_, it, preferred_element_type=f32)
                           )[:, 0, :]
                elif Nt == 1 and Nh > 1:     # head-batch: small (rel,tail), big head
                    rs = rr * rt + ir * it
                    is_ = rr * it - ir * rt
                    out = (jnp.einsum('bkd,bnd->bkn', rs, rh, preferred_element_type=f32)
                           + jnp.einsum('bkd,bnd->bkn', is_, ih, preferred_element_type=f32)
                           )[:, 0, :]
                else:
                    if fm == 'head-batch':
                        rs = rr * rt + ir * it; is_ = rr * it - ir * rt
                        s = rh * rs + ih * is_
                    else:
                        rs = rh * rr - ih * ir; is_ = rh * ir + ih * rr
                        s = rs * rt + is_ * it
                    out = jnp.sum(s, axis=2)
                o_ref[...] = out.astype(o_ref.dtype)
        else:
            # fallback: unaligned half width -> in-kernel split (correct, slower)
            operands = [head, relation, tail]
            in_specs = [op_spec(Nh, De), op_spec(Nr, Dr), op_spec(Nt, De)]

            def kernel(h_ref, r_ref, t_ref, o_ref):
                h = h_ref[...].astype(f32); r = r_ref[...].astype(f32); t = t_ref[...].astype(f32)
                rh, ih = jnp.split(h, 2, axis=2)
                rr, ir = jnp.split(r, 2, axis=2)
                rt, it = jnp.split(t, 2, axis=2)
                if fm == 'head-batch':
                    rs = rr * rt + ir * it; is_ = rr * it - ir * rt
                    s = rh * rs + ih * is_
                else:
                    rs = rh * rr - ih * ir; is_ = rh * ir + ih * rr
                    s = rs * rt + is_ * it
                o_ref[...] = jnp.sum(s, axis=2).astype(o_ref.dtype)

    elif model_name == 'RotatE':
        Dh = De // 2
        rel_hoist = (Nr == 1)
        if rel_hoist:
            # cos/sin of the relation phase computed once per batch-tile (EUP hoist)
            scratch_shapes = [pltpu.VMEM((TB, 1, Dr), f32), pltpu.VMEM((TB, 1, Dr), f32)]
            n_sem = "arbitrary"   # scratch carries state across the N axis

        if Dh % 128 == 0:
            operands = [head, head, relation, tail, tail]
            in_specs = [op_spec(Nh, De, 2, 0), op_spec(Nh, De, 2, 1),
                        op_spec(Nr, Dr),
                        op_spec(Nt, De, 2, 0), op_spec(Nt, De, 2, 1)]

            def kernel(rh_ref, ih_ref, r_ref, rt_ref, it_ref, o_ref, *scr):
                if rel_hoist:
                    cr_ref, sr_ref = scr

                    @pl.when(pl.program_id(1) == 0)
                    def _():
                        phase = r_ref[...].astype(f32) * inv_rot
                        cr_ref[...] = jnp.cos(phase)
                        sr_ref[...] = jnp.sin(phase)

                    re_rel = cr_ref[...]; im_rel = sr_ref[...]
                else:
                    phase = r_ref[...].astype(f32) * inv_rot
                    re_rel = jnp.cos(phase); im_rel = jnp.sin(phase)
                rh = rh_ref[...].astype(f32); ih = ih_ref[...].astype(f32)
                rt = rt_ref[...].astype(f32); it = it_ref[...].astype(f32)
                if fm == 'head-batch':
                    re = (re_rel * rt + im_rel * it) - rh
                    im = (re_rel * it - im_rel * rt) - ih
                else:
                    re = (rh * re_rel - ih * im_rel) - rt
                    im = (rh * im_rel + ih * re_rel) - it
                out = gamma - jnp.sum(jnp.sqrt(re * re + im * im), axis=2)
                o_ref[...] = out.astype(o_ref.dtype)
        else:
            operands = [head, relation, tail]
            in_specs = [op_spec(Nh, De), op_spec(Nr, Dr), op_spec(Nt, De)]

            def kernel(h_ref, r_ref, t_ref, o_ref, *scr):
                if rel_hoist:
                    cr_ref, sr_ref = scr

                    @pl.when(pl.program_id(1) == 0)
                    def _():
                        phase = r_ref[...].astype(f32) * inv_rot
                        cr_ref[...] = jnp.cos(phase)
                        sr_ref[...] = jnp.sin(phase)

                    re_rel = cr_ref[...]; im_rel = sr_ref[...]
                else:
                    phase = r_ref[...].astype(f32) * inv_rot
                    re_rel = jnp.cos(phase); im_rel = jnp.sin(phase)
                h = h_ref[...].astype(f32); t = t_ref[...].astype(f32)
                rh, ih = jnp.split(h, 2, axis=2)
                rt, it = jnp.split(t, 2, axis=2)
                if fm == 'head-batch':
                    re = (re_rel * rt + im_rel * it) - rh
                    im = (re_rel * it - im_rel * rt) - ih
                else:
                    re = (rh * re_rel - ih * im_rel) - rt
                    im = (rh * im_rel + ih * re_rel) - it
                out = gamma - jnp.sum(jnp.sqrt(re * re + im * im), axis=2)
                o_ref[...] = out.astype(o_ref.dtype)
    else:
        raise ValueError('model %s not supported' % model_name)

    return pl.pallas_call(
        kernel,
        out_shape=out_shape,
        grid=grid,
        in_specs=in_specs,
        out_specs=out_spec,
        scratch_shapes=scratch_shapes,
        compiler_params=pltpu.CompilerParams(
            dimension_semantics=("parallel", n_sem)),
    )(*operands)


def _pallas_score(head, relation, tail, model_name, mode, gamma, embedding_range, modulus):
    head = jnp.asarray(head)
    relation = jnp.asarray(relation)
    tail = jnp.asarray(tail)
    if mode == 'single':
        # Put batch on the lane axis ((1, B) output) so the output store is lane-dense.
        B, _, De = head.shape
        Dr = relation.shape[-1]
        out = _score_tiled(head.reshape(1, B, De), relation.reshape(1, B, Dr),
                           tail.reshape(1, B, De), model_name, 'tail-batch',
                           gamma, embedding_range, modulus)
        return out.reshape(B, 1)
    return _score_tiled(head, relation, tail, model_name, mode,
                        gamma, embedding_range, modulus)


# ----------------------------------------------------------------------------
# JAX port of the KGEModel module (forward pass only)
# ----------------------------------------------------------------------------
class KGEModel:
    def __init__(self, model_name, nentity, nrelation, hidden_dim, gamma,
                 double_entity_embedding=False, double_relation_embedding=False,
                 embedding_dtype=jnp.float32, key=jax.random.PRNGKey(0)):
        self.model_name = model_name
        self.nentity = nentity
        self.nrelation = nrelation
        self.hidden_dim = hidden_dim
        self.epsilon = 2.0
        self.double_entity_embedding = double_entity_embedding
        self.double_relation_embedding = double_relation_embedding
        self.gamma = float(gamma)
        self.embedding_range = float((self.gamma + self.epsilon) / hidden_dim)
        self.entity_dim = hidden_dim * 2 if double_entity_embedding else hidden_dim
        self.relation_dim = hidden_dim * 2 if double_relation_embedding else hidden_dim

        diff_dim = 64 if double_entity_embedding else 32
        k1, k2, k3, k4, k5, k6 = jax.random.split(key, 6)

        def xavier_uniform(k, shape):
            fan_out, fan_in = shape
            bound = math.sqrt(6.0 / (fan_in + fan_out))
            return jax.random.uniform(k, shape, jnp.float32, -bound, bound)

        # Linear layers exist in __init__ but are NOT used in forward(); initialized only
        # for shape fidelity with the PyTorch module.
        self.linear_layer_w = xavier_uniform(k1, (diff_dim, self.entity_dim))
        self.linear_layer_b = jnp.zeros((diff_dim,), jnp.float32)
        self.linear_layer_diff_w = xavier_uniform(k2, (self.entity_dim, diff_dim))
        self.linear_layer_diff_b = jnp.zeros((self.entity_dim,), jnp.float32)
        self.linear_layer_relation_w = xavier_uniform(k3, (diff_dim, self.relation_dim))
        self.linear_layer_relation_b = jnp.zeros((diff_dim,), jnp.float32)
        self.linear_layer_dim_w = xavier_uniform(k4, (32, 64))
        self.linear_layer_dim_b = jnp.zeros((32,), jnp.float32)

        r = self.embedding_range
        # embedding_dtype=jnp.bfloat16 halves HBM traffic of the streamed embeddings;
        # the kernel upcasts to f32 for the math.  Default f32 preserves exact semantics.
        self.entity_embedding = jax.random.uniform(
            k5, (nentity, self.entity_dim), jnp.float32, -r, r).astype(embedding_dtype)
        self.relation_embedding = jax.random.uniform(
            k6, (nrelation, self.relation_dim), jnp.float32, -r, r).astype(embedding_dtype)

        self.modulus = 0.5 * self.embedding_range if model_name == 'pRotatE' else 1.0

        if model_name not in ['TransE', 'DistMult', 'ComplEx', 'RotatE', 'pRotatE']:
            raise ValueError('model %s not supported' % model_name)
        if model_name == 'RotatE' and (not double_entity_embedding or double_relation_embedding):
            raise ValueError('RotatE should use --double_entity_embedding')
        if model_name == 'ComplEx' and (not double_entity_embedding or not double_relation_embedding):
            raise ValueError('ComplEx should use double entity and relation embedding')

    # -- glue: embedding gather (torch.index_select) stays in plain JAX ------------------
    def _gather(self, sample, mode):
        if mode == 'single':
            head = jnp.take(self.entity_embedding, sample[:, 0], axis=0)[:, None, :]
            relation = jnp.take(self.relation_embedding, sample[:, 1], axis=0)[:, None, :]
            tail = jnp.take(self.entity_embedding, sample[:, 2], axis=0)[:, None, :]
        elif mode == 'head-batch':
            tail_part, head_part = sample
            B, N = head_part.shape
            head = jnp.take(self.entity_embedding, head_part.reshape(-1), axis=0).reshape(B, N, -1)
            relation = jnp.take(self.relation_embedding, tail_part[:, 1], axis=0)[:, None, :]
            tail = jnp.take(self.entity_embedding, tail_part[:, 2], axis=0)[:, None, :]
        elif mode == 'tail-batch':
            head_part, tail_part = sample
            B, N = tail_part.shape
            head = jnp.take(self.entity_embedding, head_part[:, 0], axis=0)[:, None, :]
            relation = jnp.take(self.relation_embedding, head_part[:, 1], axis=0)[:, None, :]
            tail = jnp.take(self.entity_embedding, tail_part.reshape(-1), axis=0).reshape(B, N, -1)
        else:
            raise ValueError('mode %s not supported' % mode)
        return head, relation, tail

    def forward(self, sample, mode='single', method=None,
                h_emb_diff=None, t_emb_diff=None, h_emb=None, r_emb=None, t_emb=None):
        if method == 'id' or mode == 'single':
            head, relation, tail = self._gather(sample, mode)
        elif mode == 'head-batch':
            head, relation, tail = h_emb_diff, r_emb, t_emb
        elif mode == 'tail-batch':
            head, relation, tail = h_emb, r_emb, t_emb_diff
        else:
            raise ValueError('mode %s not supported' % mode)

        return _pallas_score(head, relation, tail, self.model_name, mode,
                             self.gamma, self.embedding_range, self.modulus)

    # -- pure-JAX reference of the scoring math (for verification only) ------------------
    def _reference_score(self, head, relation, tail, mode):
        g, er, mod = self.gamma, self.embedding_range, self.modulus
        name = self.model_name
        head = head.astype(jnp.float32); relation = relation.astype(jnp.float32)
        tail = tail.astype(jnp.float32)
        if name == 'TransE':
            s = head + (relation - tail) if mode == 'head-batch' else head + relation - tail
            return g - jnp.sum(jnp.abs(s), axis=2)
        if name == 'DistMult':
            s = head * (relation * tail) if mode == 'head-batch' else head * relation * tail
            return jnp.sum(s, axis=2)
        if name == 'ComplEx':
            rh, ih = jnp.split(head, 2, 2); rr, ir = jnp.split(relation, 2, 2)
            rt, it = jnp.split(tail, 2, 2)
            if mode == 'head-batch':
                rs = rr * rt + ir * it; is_ = rr * it - ir * rt
                s = rh * rs + ih * is_
            else:
                rs = rh * rr - ih * ir; is_ = rh * ir + ih * rr
                s = rs * rt + is_ * it
            return jnp.sum(s, axis=2)
        if name == 'RotatE':
            pi = 3.141592653589793
            rh, ih = jnp.split(head, 2, 2); rt, it = jnp.split(tail, 2, 2)
            ph = relation / (er / pi); rr = jnp.cos(ph); ir = jnp.sin(ph)
            if mode == 'head-batch':
                rs = rr * rt + ir * it - rh; is_ = rr * it - ir * rt - ih
            else:
                rs = rh * rr - ih * ir - rt; is_ = rh * ir + ih * rr - it
            return g - jnp.sum(jnp.sqrt(rs * rs + is_ * is_), axis=2)
        if name == 'pRotatE':
            pi = 3.1415926235897933
            ph, pr, pt = head / (er / pi), relation / (er / pi), tail / (er / pi)
            s = ph + (pr - pt) if mode == 'head-batch' else ph + pr - pt
            return g - jnp.sum(jnp.abs(jnp.sin(s)), axis=2) * mod
        raise ValueError(name)

    def reference_forward(self, sample, mode='single'):
        head, relation, tail = self._gather(sample, mode)
        return self._reference_score(head, relation, tail, mode)


# ----------------------------------------------------------------------------
# Demo / self-check
# ----------------------------------------------------------------------------
if __name__ == "__main__":
    key = jax.random.PRNGKey(0)
    B, NEG = 4, 8
    nentity, nrelation, gamma = 64, 16, 12.0

    kh, kr, kt, kn = jax.random.split(key, 4)
    positive_sample = jnp.stack([
        jax.random.randint(kh, (B,), 0, nentity),
        jax.random.randint(kr, (B,), 0, nrelation),
        jax.random.randint(kt, (B,), 0, nentity),
    ], axis=1).astype(jnp.int32)                                   # (B, 3)
    negative_sample = jax.random.randint(kn, (B, NEG), 0, nentity).astype(jnp.int32)  # (B, NEG)

    configs = [
        # (model, hidden_dim, double_ent, double_rel, mode)
        ('TransE',   128, False, False, 'single'),
        ('TransE',   128, False, False, 'tail-batch'),
        ('DistMult', 128, False, False, 'head-batch'),
        ('DistMult', 128, False, False, 'tail-batch'),
        ('ComplEx',  128, True,  True,  'tail-batch'),
        ('ComplEx',  128, True,  True,  'head-batch'),
        ('ComplEx',  32,  True,  True,  'tail-batch'),   # unaligned halves -> fallback path
        ('RotatE',   128, True,  False, 'tail-batch'),
        ('RotatE',   128, True,  False, 'head-batch'),
        ('RotatE',   32,  True,  False, 'head-batch'),   # unaligned halves -> fallback path
        ('pRotatE',  128, False, False, 'single'),
        ('pRotatE',  128, False, False, 'tail-batch'),
    ]

    ok = True
    for idx, (name, hidden, de, dr, mode) in enumerate(configs):
        model = KGEModel(name, nentity, nrelation, hidden, gamma,
                         double_entity_embedding=de, double_relation_embedding=dr,
                         key=jax.random.fold_in(key, idx))
        sample = positive_sample if mode == 'single' else (positive_sample, negative_sample)
        score = jax.block_until_ready(model.forward(sample, mode=mode, method='id'))
        ref = jax.block_until_ready(model.reference_forward(sample, mode=mode))
        s_np, r_np = np.asarray(score), np.asarray(ref)
        # Tolerance: the MXU paths reassociate the hidden-dim reduction and may use
        # bf16 product passes at default precision; error is << 1e-4 at these magnitudes.
        if score.shape != ref.shape or not np.allclose(s_np, r_np, rtol=1e-3, atol=3e-4):
            ok = False
            err = float(np.max(np.abs(s_np - r_np))) if score.shape == ref.shape else float('nan')
            print(f"MISMATCH {name}/h{hidden}/{mode}: shapes {score.shape} vs {ref.shape}, "
                  f"max err {err:.3e}")

    if ok:
        print("KERNEL_OK")
</pallas_src>

<mosaic_0001>
module attributes {stable_mosaic.version = 11 : i64} {
  func.func @kernel(%arg0: i32, %arg1: i32, %arg2: memref<1x4x128xf32, #tpu.memory_space<vmem>>, %arg3: memref<1x4x128xf32, #tpu.memory_space<vmem>>, %arg4: memref<1x4x128xf32, #tpu.memory_space<vmem>>, %arg5: memref<1x4xf32, #tpu.memory_space<vmem>>) attributes {dimension_semantics = [#tpu.dimension_semantics<parallel>, #tpu.dimension_semantics<parallel>], iteration_bounds = array<i64: 1, 1>, scalar_prefetch = 0 : i64, scratch_operands = 0 : i64, tpu.core_type = #tpu.core_type<tc>, window_params = [{transform_indices = @transform_0, window_bounds = array<i64: 1, 4, 128>}, {transform_indices = @transform_1, window_bounds = array<i64: 1, 4, 128>}, {transform_indices = @transform_2, window_bounds = array<i64: 1, 4, 128>}, {transform_indices = @transform_3, window_bounds = array<i64: 1, 4>}]} {
    %c0 = arith.constant 0 : index
    %c0_0 = arith.constant 0 : index
    %c0_1 = arith.constant 0 : index
    %0 = vector.load %arg2[%c0, %c0_0, %c0_1] : memref<1x4x128xf32, #tpu.memory_space<vmem>>, vector<1x4x128xf32>
    %c0_2 = arith.constant 0 : index
    %c0_3 = arith.constant 0 : index
    %c0_4 = arith.constant 0 : index
    %1 = vector.load %arg3[%c0_2, %c0_3, %c0_4] : memref<1x4x128xf32, #tpu.memory_space<vmem>>, vector<1x4x128xf32>
    %c0_5 = arith.constant 0 : index
    %c0_6 = arith.constant 0 : index
    %c0_7 = arith.constant 0 : index
    %2 = vector.load %arg4[%c0_5, %c0_6, %c0_7] : memref<1x4x128xf32, #tpu.memory_space<vmem>>, vector<1x4x128xf32>
    %3 = arith.addf %0, %1 : vector<1x4x128xf32>
    %4 = arith.subf %3, %2 : vector<1x4x128xf32>
    %5 = math.absf %4 : vector<1x4x128xf32>
    %cst = arith.constant dense<0.000000e+00> : vector<1x4xf32>
    %6 = vector.multi_reduction <add>, %5, %cst [2] : vector<1x4x128xf32> to vector<1x4xf32>
    %cst_8 = arith.constant 1.200000e+01 : f32
    %7 = vector.broadcast %cst_8 : f32 to vector<1x4xf32>
    %8 = arith.subf %7, %6 : vector<1x4xf32>
    %c0_9 = arith.constant 0 : index
    %c0_10 = arith.constant 0 : index
    %9 = vector.load %arg5[%c0_9, %c0_10] : memref<1x4xf32, #tpu.memory_space<vmem>>, vector<1x4xf32>
    tpu.vector_store %arg5[%c0_9, %c0_10], %8 {strides = array<i32>} : memref<1x4xf32, #tpu.memory_space<vmem>>, vector<1x4xf32>,
    return
  }
  func.func @transform_0(%arg0: i32, %arg1: i32) -> (i32, i32, i32) {
    %c0_i32 = arith.constant 0 : i32
    %c0_i32_0 = arith.constant 0 : i32
    return %arg0, %arg1, %c0_i32 : i32, i32, i32
  }
  func.func @transform_1(%arg0: i32, %arg1: i32) -> (i32, i32, i32) {
    %c0_i32 = arith.constant 0 : i32
    %c0_i32_0 = arith.constant 0 : i32
    return %arg0, %arg1, %c0_i32 : i32, i32, i32
  }
  func.func @transform_2(%arg0: i32, %arg1: i32) -> (i32, i32, i32) {
    %c0_i32 = arith.constant 0 : i32
    %c0_i32_0 = arith.constant 0 : i32
    return %arg0, %arg1, %c0_i32 : i32, i32, i32
  }
  func.func @transform_3(%arg0: i32, %arg1: i32) -> (i32, i32) {
    %c0_i32 = arith.constant 0 : i32
    return %arg0, %arg1 : i32, i32
  }
}

</mosaic_0001>

<llo_original>
// kernel: tpu_custom_call.1
$region0: #{tpu_custom_call.1}
  #allocation0 [shape = 'u32[]', space=smem, size = 0x4, offset = 0x4, fixed_abs, tag = 'smem constant byte address 0x4 - core index']
  #allocation1 [shape = 'u32[144,128]{1,0:T(1,128)}', space=vmem, size = 0x12000, scoped, tag = 'internal scratch']
  %s0 = inlined_call_operand.hbm [shape: f32[1,4,128], index: 0, kind: input, shape index: {}]
  %s1 = inlined_call_operand.hbm [shape: f32[1,4,128], index: 1, kind: input, shape index: {}]
  %s2 = inlined_call_operand.vmem [shape: f32[1,4,128], index: 2, kind: input, shape index: {}]
  %s3 = inlined_call_operand.hbm [shape: f32[1,4], index: 3, kind: output, shape index: {}]
  %s4 = sld [smem:[#allocation0]]
  $region30: #{tpu_custom_call.1} parent=0
    _
  %s6 = ssub.s32 1, %s4
  %s7 = scalar_select 0, %s6, %s4
  $region1: #{tpu_custom_call.1} parent=0
    #allocation2 [shape = 'u8[2048]{0}', space=vmem, size = 0x800, scoped, tag = 'input window, operand 0, single buffered']
    #allocation3 [shape = 's32[1]{0}', space=sflag, size = 0x4, scoped, tag = 'scoped memory for tpu_custom_call.1']
    #allocation4 [shape = 's32[1]{0}', space=sflag, size = 0x4, scoped, tag = 'scoped memory for tpu_custom_call.1']
    #allocation5 [shape = 'u8[2048]{0}', space=vmem, size = 0x800, scoped, tag = 'input window, operand 1, single buffered']
    #allocation6 [shape = 's32[1]{0}', space=sflag, size = 0x4, scoped, tag = 'scoped memory for tpu_custom_call.1']
    #allocation7 [shape = 'u8[512]{0}', space=vmem, size = 0x400, scoped, tag = 'output window, operand 0, single buffered']
    %8 = vsyncpa [#allocation3], 0
    %9 = vsyncpa [#allocation6], 0
    %10 = vsyncpa [#allocation4], 0
    // Predicated region
    $region2: #{tpu_custom_call.1} parent=1 // pred_check
      _
    $region3: #{tpu_custom_call.1} parent=1 // pred_check_branch
      %12 = sbr.rel (0) target = $region5
    $region4: #{tpu_custom_call.1} parent=1 // pred_region
      %s14 = ssub.s32 64, 64
      %15 = vsyncadd [#allocation3], %s14
      %s17 = sshll.u32 [#allocation2], 4
      %s18 = int_to_ptr.vmem [resolvable:$true] %s17
      %20 = dma.hbm_to_vmem [thread:$0]  %s0, 64, %s18, [#allocation3]
    $region5: #{tpu_custom_call.1} parent=1 // pred_fallthru
      _
    // Predicated region
    $region6: #{tpu_custom_call.1} parent=1 // pred_check
      _
    $region7: #{tpu_custom_call.1} parent=1 // pred_check_branch
      %22 = sbr.rel (0) target = $region9
    $region8: #{tpu_custom_call.1} parent=1 // pred_region
      %s24 = ssub.s32 64, 64
      %25 = vsyncadd [#allocation6], %s24
      %s27 = sshll.u32 [#allocation5], 4
      %s28 = int_to_ptr.vmem [resolvable:$true] %s27
      %30 = dma.hbm_to_vmem [thread:$0]  %s1, 64, %s28, [#allocation6]
    $region9: #{tpu_custom_call.1} parent=1 // pred_fallthru
      _
    // Predicated region
    $region10: #{tpu_custom_call.1} parent=1 // pred_check
      _
    $region11: #{tpu_custom_call.1} parent=1 // pred_check_branch
      %32 = sbr.rel (0) target = $region13
    $region12: #{tpu_custom_call.1} parent=1 // pred_region
      _
    $region13: #{tpu_custom_call.1} parent=1 // pred_fallthru
      _
    // Predicated region
    $region14: #{tpu_custom_call.1} parent=1 // pred_check
      _
    $region15: #{tpu_custom_call.1} parent=1 // pred_check_branch
      %34 = sbr.rel (0) target = $region17
    $region16: #{tpu_custom_call.1} parent=1 // pred_region
      %35 = dma.done [#allocation3], 64
    $region17: #{tpu_custom_call.1} parent=1 // pred_fallthru
      _
    // Predicated region
    $region18: #{tpu_custom_call.1} parent=1 // pred_check
      _
    $region19: #{tpu_custom_call.1} parent=1 // pred_check_branch
      %37 = sbr.rel (0) target = $region21
    $region20: #{tpu_custom_call.1} parent=1 // pred_region
      %38 = dma.done [#allocation6], 64
    $region21: #{tpu_custom_call.1} parent=1 // pred_fallthru
      _
    %v39 = vld [vmem:[#allocation2] sm:$0xf]
    %v40 = vld [vmem:[#allocation5] sm:$0xf]
    %v41 = vld [vmem:[%s2] sm:$0xf]
    %v42 = vadd.f32 %v39, %v40
    %v43 = vsub.f32 %v42, %v41
    %v44 = vand.u32 2147483647, %v43
    %vm45 = vcmask 1043456
    %v46 = vsel %vm45, %v44, 0.0
    %47 = vadd.xlane.f32.xlu0 %v46
    %v48 = vpop.xlane.xlu0 %47
    %v49 = vsub.f32 12.0, %v48
    %v51 = vlaneseq
    %v52 = vand.u32 %v51, 127
    %v53 = vlaneseq
    %v54 = vshrl.u32 %v53, 7
    %v55 = vsub.s32 %v52, %v54
    %v56 = vrot.slane %v49, %v55
    %vm58 = vcmask 24576
    %59 = vst.msk [vmem:[#allocation7] sm:$0x1] %vm58, %v56
    // Predicated region
    $region22: #{tpu_custom_call.1} parent=1 // pred_check
      _
    $region23: #{tpu_custom_call.1} parent=1 // pred_check_branch
      %61 = sbr.rel (0) target = $region25
    $region24: #{tpu_custom_call.1} parent=1 // pred_region
      %s63 = ssub.s32 16, 16
      %64 = vsyncadd [#allocation4], %s63
      %s66 = sshll.u32 [#allocation7], 4
      %s67 = int_to_ptr.vmem [resolvable:$true] %s66
      %69 = dma.vmem_to_hbm [thread:$0]  %s67, 16, %s3, [#allocation4]
    $region25: #{tpu_custom_call.1} parent=1 // pred_fallthru
      _
    // Predicated region
    $region26: #{tpu_custom_call.1} parent=1 // pred_check
      _
    $region27: #{tpu_custom_call.1} parent=1 // pred_check_branch
      %71 = sbr.rel (0) target = $region29
    $region28: #{tpu_custom_call.1} parent=1 // pred_region
      %72 = dma.done [#allocation4], 16
    $region29: #{tpu_custom_call.1} parent=1 // pred_fallthru
      _
    %73 = vsyncpa [#allocation3], 1
    %74 = vsyncpa [#allocation6], 1
    %75 = vsyncpa [#allocation4], 1

</llo_original>
